<compile_context>
chip_gen: v7x
topology: tpu7x:2x2x1
jax: 0.10.0
libtpu: 0.0.40
codegen_flags: <defaults>
</compile_context>

<pallas_src>
import functools

import jax
import jax.numpy as jnp
from jax import lax
from jax.experimental import pallas as pl
from jax.experimental.pallas import tpu as pltpu


# -----------------------------------------------------------------------------
# In-register im2col: 9 spatially shifted, zero-padded copies of (C, H*W).
# -----------------------------------------------------------------------------
def _conv3x3_taps(x, H, W):
    """Returns list of 9 arrays (C, H*W) f32: value at (h+dh, w+dw) or 0."""
    C, HW = x.shape
    pos = lax.broadcasted_iota(jnp.int32, (C, HW), 1)      # flattened position
    col = jnp.bitwise_and(pos, W - 1)                      # pos % W (W = 2^k)
    taps = []
    for dh in (-1, 0, 1):
        for dw in (-1, 0, 1):
            s = dh * W + dw
            t = x if s == 0 else pltpu.roll(x, (-s) % HW, 1)   # XLU rotate
            mask = None
            if dh == -1:
                mask = pos >= W                       # need h >= 1
            elif dh == 1:
                mask = pos < (H - 1) * W              # need h <= H-2
            if dw == -1:
                m = col >= 1                          # need w >= 1
                mask = m if mask is None else (mask & m)
            elif dw == 1:
                m = col < (W - 1)                     # need w <= W-2
                mask = m if mask is None else (mask & m)
            if mask is not None:
                t = jnp.where(mask, t, 0.0)
            taps.append(t)
    return taps


# -----------------------------------------------------------------------------
# Pallas kernel: full SVDBlock forward for one batch element.
# -----------------------------------------------------------------------------
def _svd_block_kernel(x_ref, w1_ref, b1_ref, w2sc_ref, b2sc_ref, out_ref, *,
                      H, W):
    # x_ref    : (1, Cin, H*W)        f32   spatial-on-lanes
    # w1_ref   : (Hch, 9*Cin)         bf16  c1 im2col weights
    # b1_ref   : (Hch, 1)             f32
    # w2sc_ref : (Cout, 9*Hch + Cin)  bf16  [c2 im2col | 1x1 shortcut] fused
    # b2sc_ref : (Cout, 1)            f32   b2 + bsc
    # out_ref  : (1, Cout, H*W)       f32   lane-dense output
    x = x_ref[0]                                        # (Cin, HW)

    # ---- h1 = relu(c1(relu(x))) : one matmul over the 9 taps of relu(x) ----
    rx = jnp.maximum(x, 0.0)                            # relu(0)=0 == zero pad
    p1 = jnp.concatenate(_conv3x3_taps(rx, H, W), axis=0)
    p1 = p1.astype(jnp.bfloat16)                        # (9*Cin, HW)
    h1 = jnp.dot(w1_ref[...], p1, preferred_element_type=jnp.float32)
    h1 = jnp.maximum(h1 + b1_ref[...], 0.0)             # (Hch, HW)

    # ---- out = c2(h1) + c_sc(x) : single fused matmul ------------------------
    p2 = jnp.concatenate(_conv3x3_taps(h1, H, W) + [x], axis=0)
    p2 = p2.astype(jnp.bfloat16)                        # (9*Hch + Cin, HW)
    y = jnp.dot(w2sc_ref[...], p2, preferred_element_type=jnp.float32)
    out_ref[0] = y + b2sc_ref[...]                      # (Cout, HW)


# -----------------------------------------------------------------------------
# Wrapper: NCHW in / NCHW out, grid over batch (parallel -> v7x megacore).
# -----------------------------------------------------------------------------
def svd_block_forward(x_nchw, params):
    w1, b1, w2, b2, wsc, bsc = params
    N, Cin, H, W = x_nchw.shape
    assert W & (W - 1) == 0, "W must be a power of two (column border mask)"
    HW = H * W
    K = w1.shape[-1]                       # 3
    Hch = w1.shape[0]
    Cout = w2.shape[0]

    # NCHW -> (N, C, H*W): the kernel layout IS channels-on-sublanes /
    # spatial-on-lanes, so boundary handling is a pure reshape (no transpose).
    x_flat = x_nchw.reshape(N, Cin, HW).astype(jnp.float32)

    # torch OIHW -> (O, kh*kw*I), matching the tap order of _conv3x3_taps.
    w1_mat = jnp.transpose(w1, (0, 2, 3, 1)).reshape(Hch, K * K * Cin)
    w2_mat = jnp.transpose(w2, (0, 2, 3, 1)).reshape(Cout, K * K * Hch)
    wsc_mat = wsc[:, :, 0, 0]                                   # (Cout, Cin)
    w2sc_bf = jnp.concatenate([w2_mat, wsc_mat], axis=1).astype(jnp.bfloat16)
    w1_bf = w1_mat.astype(jnp.bfloat16)
    b1_c = b1.reshape(Hch, 1).astype(jnp.float32)
    b2sc_c = (b2 + bsc).reshape(Cout, 1).astype(jnp.float32)

    kernel = functools.partial(_svd_block_kernel, H=H, W=W)
    out_flat = pl.pallas_call(
        kernel,
        out_shape=jax.ShapeDtypeStruct((N, Cout, HW), jnp.float32),
        grid=(N,),
        in_specs=[
            pl.BlockSpec((1, Cin, HW), lambda n: (n, 0, 0)),
            pl.BlockSpec((Hch, K * K * Cin), lambda n: (0, 0)),
            pl.BlockSpec((Hch, 1), lambda n: (0, 0)),
            pl.BlockSpec((Cout, K * K * Hch + Cin), lambda n: (0, 0)),
            pl.BlockSpec((Cout, 1), lambda n: (0, 0)),
        ],
        out_specs=pl.BlockSpec((1, Cout, HW), lambda n: (n, 0, 0)),
        compiler_params=pltpu.CompilerParams(
            dimension_semantics=("parallel",)),
    )(x_flat, w1_bf, b1_c, w2sc_bf, b2sc_c)

    return out_flat.reshape(N, Cout, H, W)


# -----------------------------------------------------------------------------
# Deterministic SVD-parameterized conv weights (glue, plain JAX).
# -----------------------------------------------------------------------------
def _make_svd_conv_params(key, out_ch, in_ch, ksize):
    r = min(out_ch, in_ch * ksize * ksize)
    ku, kv = jax.random.split(key)
    u_raw = jax.random.normal(ku, (out_ch, r), dtype=jnp.float32)
    v_raw = jax.random.normal(kv, (in_ch * ksize * ksize, r), dtype=jnp.float32)
    u, _ = jnp.linalg.qr(u_raw)                 # (out_ch, r) orthonormal cols
    v, _ = jnp.linalg.qr(v_raw)                 # (in*k*k, r) orthonormal cols
    s = jnp.linspace(0.5, 1.5, r, dtype=jnp.float32)
    w_mat = (u * s[None, :]) @ v.T              # W = U diag(s) V^T
    w = w_mat.reshape(out_ch, in_ch, ksize, ksize)
    b = 0.01 * jnp.arange(out_ch, dtype=jnp.float32)
    return w, b


# -----------------------------------------------------------------------------
# Pure-JAX reference (lax conv) with the SAME bf16-operand / f32-accum rounding.
# -----------------------------------------------------------------------------
def _ref_forward(x_nchw, params):
    w1, b1, w2, b2, wsc, bsc = params
    x = x_nchw.astype(jnp.float32)

    def conv(inp, w_oihw, b, pad):
        w_hwio = jnp.transpose(w_oihw, (2, 3, 1, 0)).astype(jnp.bfloat16)
        y = lax.conv_general_dilated(
            inp.astype(jnp.bfloat16), w_hwio,
            window_strides=(1, 1), padding=[(pad, pad), (pad, pad)],
            dimension_numbers=("NCHW", "HWIO", "NCHW"),
            preferred_element_type=jnp.float32)
        return y + b[None, :, None, None]

    h = conv(jax.nn.relu(x), w1, b1, 1)
    h = conv(jax.nn.relu(h), w2, b2, 1)
    sc = conv(x, wsc, bsc, 0)
    return sc + h


if __name__ == "__main__":
    # SVDBlock(in_ch=4, out_ch=8): h_ch = in_ch = 4, learnable_sc = True.
    N, in_ch, H, W = 2, 4, 16, 16
    out_ch, h_ch, ksize = 8, 4, 3

    key = jax.random.PRNGKey(0)
    kx, k1, k2, k3 = jax.random.split(key, 4)
    x = jax.random.normal(kx, (N, in_ch, H, W), dtype=jnp.float32)

    w1, b1 = _make_svd_conv_params(k1, h_ch, in_ch, ksize)    # c1 : 4 -> 4, 3x3
    w2, b2 = _make_svd_conv_params(k2, out_ch, h_ch, ksize)   # c2 : 4 -> 8, 3x3
    wsc, bsc = _make_svd_conv_params(k3, out_ch, in_ch, 1)    # c_sc: 4 -> 8, 1x1
    params = (w1, b1, w2, b2, wsc, bsc)

    out = jax.block_until_ready(svd_block_forward(x, params))
    ref = jax.block_until_ready(_ref_forward(x, params))

    assert out.shape == (N, out_ch, H, W), out.shape
    max_err = float(jnp.max(jnp.abs(out - ref)))
    # Kernel and reference both use bf16 operands with f32 accumulation; 5e-3
    # comfortably covers the rare 1-ulp bf16 divergence of the recomputed
    # intermediate activation.
    assert jnp.allclose(out, ref, atol=5e-3, rtol=5e-3), max_err
    print("KERNEL_OK")
</pallas_src>

<mosaic_0001>
module attributes {stable_mosaic.version = 11 : i64} {
  func.func @_svd_block_kernel(%arg0: i32, %arg1: memref<1x4x256xf32, #tpu.memory_space<vmem>>, %arg2: memref<4x36xbf16, #tpu.memory_space<vmem>>, %arg3: memref<4x1xf32, #tpu.memory_space<vmem>>, %arg4: memref<8x40xbf16, #tpu.memory_space<vmem>>, %arg5: memref<8x1xf32, #tpu.memory_space<vmem>>, %arg6: memref<1x8x256xf32, #tpu.memory_space<vmem>>) attributes {dimension_semantics = [#tpu.dimension_semantics<parallel>], iteration_bounds = array<i64: 2>, scalar_prefetch = 0 : i64, scratch_operands = 0 : i64, tpu.core_type = #tpu.core_type<tc>, window_params = [{transform_indices = @transform_0, window_bounds = array<i64: 1, 4, 256>}, {pipeline_mode = #tpu.pipeline_mode<synchronous>, transform_indices = @transform_1, window_bounds = array<i64: 4, 36>}, {pipeline_mode = #tpu.pipeline_mode<synchronous>, transform_indices = @transform_2, window_bounds = array<i64: 4, 1>}, {pipeline_mode = #tpu.pipeline_mode<synchronous>, transform_indices = @transform_3, window_bounds = array<i64: 8, 40>}, {pipeline_mode = #tpu.pipeline_mode<synchronous>, transform_indices = @transform_4, window_bounds = array<i64: 8, 1>}, {transform_indices = @transform_5, window_bounds = array<i64: 1, 8, 256>}]} {
    %c0 = arith.constant 0 : index
    %c0_0 = arith.constant 0 : index
    %c0_1 = arith.constant 0 : index
    %0 = vector.load %arg1[%c0, %c0_0, %c0_1] : memref<1x4x256xf32, #tpu.memory_space<vmem>>, vector<1x4x256xf32>
    %1 = vector.shape_cast %0 : vector<1x4x256xf32> to vector<4x256xf32>
    %cst = arith.constant 0.000000e+00 : f32
    %2 = vector.broadcast %cst : f32 to vector<4x256xf32>
    %3 = arith.maximumf %1, %2 : vector<4x256xf32>
    %4 = tpu.iota {dimensions = array<i32: 1>} : vector<4x256xi32>
    %c15_i32 = arith.constant 15 : i32
    %5 = vector.broadcast %c15_i32 : i32 to vector<4x256xi32>
    %6 = arith.andi %4, %5 : vector<4x256xi32>
    %c17_i32 = arith.constant 17 : i32
    %7 = tpu.dynamic_rotate %3 by %c17_i32 dim 1 : vector<4x256xf32>, i32 -> vector<4x256xf32>
    %c16_i32 = arith.constant 16 : i32
    %8 = vector.broadcast %c16_i32 : i32 to vector<4x256xi32>
    %9 = arith.cmpi sge, %4, %8 : vector<4x256xi32>
    %c1_i32 = arith.constant 1 : i32
    %10 = vector.broadcast %c1_i32 : i32 to vector<4x256xi32>
    %11 = arith.cmpi sge, %6, %10 : vector<4x256xi32>
    %12 = arith.andi %9, %11 : vector<4x256xi1>
    %cst_2 = arith.constant 0.000000e+00 : f32
    %13 = vector.broadcast %cst_2 : f32 to vector<4x256xf32>
    %14 = arith.select %12, %7, %13 : vector<4x256xi1>, vector<4x256xf32>
    %c16_i32_3 = arith.constant 16 : i32
    %15 = tpu.dynamic_rotate %3 by %c16_i32_3 dim 1 : vector<4x256xf32>, i32 -> vector<4x256xf32>
    %c16_i32_4 = arith.constant 16 : i32
    %16 = vector.broadcast %c16_i32_4 : i32 to vector<4x256xi32>
    %17 = arith.cmpi sge, %4, %16 : vector<4x256xi32>
    %cst_5 = arith.constant 0.000000e+00 : f32
    %18 = vector.broadcast %cst_5 : f32 to vector<4x256xf32>
    %19 = arith.select %17, %15, %18 : vector<4x256xi1>, vector<4x256xf32>
    %c15_i32_6 = arith.constant 15 : i32
    %20 = tpu.dynamic_rotate %3 by %c15_i32_6 dim 1 : vector<4x256xf32>, i32 -> vector<4x256xf32>
    %c16_i32_7 = arith.constant 16 : i32
    %21 = vector.broadcast %c16_i32_7 : i32 to vector<4x256xi32>
    %22 = arith.cmpi sge, %4, %21 : vector<4x256xi32>
    %c15_i32_8 = arith.constant 15 : i32
    %23 = vector.broadcast %c15_i32_8 : i32 to vector<4x256xi32>
    %24 = arith.cmpi slt, %6, %23 : vector<4x256xi32>
    %25 = arith.andi %22, %24 : vector<4x256xi1>
    %cst_9 = arith.constant 0.000000e+00 : f32
    %26 = vector.broadcast %cst_9 : f32 to vector<4x256xf32>
    %27 = arith.select %25, %20, %26 : vector<4x256xi1>, vector<4x256xf32>
    %c1_i32_10 = arith.constant 1 : i32
    %28 = tpu.dynamic_rotate %3 by %c1_i32_10 dim 1 : vector<4x256xf32>, i32 -> vector<4x256xf32>
    %c1_i32_11 = arith.constant 1 : i32
    %29 = vector.broadcast %c1_i32_11 : i32 to vector<4x256xi32>
    %30 = arith.cmpi sge, %6, %29 : vector<4x256xi32>
    %cst_12 = arith.constant 0.000000e+00 : f32
    %31 = vector.broadcast %cst_12 : f32 to vector<4x256xf32>
    %32 = arith.select %30, %28, %31 : vector<4x256xi1>, vector<4x256xf32>
    %c255_i32 = arith.constant 255 : i32
    %33 = tpu.dynamic_rotate %3 by %c255_i32 dim 1 : vector<4x256xf32>, i32 -> vector<4x256xf32>
    %c15_i32_13 = arith.constant 15 : i32
    %34 = vector.broadcast %c15_i32_13 : i32 to vector<4x256xi32>
    %35 = arith.cmpi slt, %6, %34 : vector<4x256xi32>
    %cst_14 = arith.constant 0.000000e+00 : f32
    %36 = vector.broadcast %cst_14 : f32 to vector<4x256xf32>
    %37 = arith.select %35, %33, %36 : vector<4x256xi1>, vector<4x256xf32>
    %c241_i32 = arith.constant 241 : i32
    %38 = tpu.dynamic_rotate %3 by %c241_i32 dim 1 : vector<4x256xf32>, i32 -> vector<4x256xf32>
    %c240_i32 = arith.constant 240 : i32
    %39 = vector.broadcast %c240_i32 : i32 to vector<4x256xi32>
    %40 = arith.cmpi slt, %4, %39 : vector<4x256xi32>
    %c1_i32_15 = arith.constant 1 : i32
    %41 = vector.broadcast %c1_i32_15 : i32 to vector<4x256xi32>
    %42 = arith.cmpi sge, %6, %41 : vector<4x256xi32>
    %43 = arith.andi %40, %42 : vector<4x256xi1>
    %cst_16 = arith.constant 0.000000e+00 : f32
    %44 = vector.broadcast %cst_16 : f32 to vector<4x256xf32>
    %45 = arith.select %43, %38, %44 : vector<4x256xi1>, vector<4x256xf32>
    %c240_i32_17 = arith.constant 240 : i32
    %46 = tpu.dynamic_rotate %3 by %c240_i32_17 dim 1 : vector<4x256xf32>, i32 -> vector<4x256xf32>
    %c240_i32_18 = arith.constant 240 : i32
    %47 = vector.broadcast %c240_i32_18 : i32 to vector<4x256xi32>
    %48 = arith.cmpi slt, %4, %47 : vector<4x256xi32>
    %cst_19 = arith.constant 0.000000e+00 : f32
    %49 = vector.broadcast %cst_19 : f32 to vector<4x256xf32>
    %50 = arith.select %48, %46, %49 : vector<4x256xi1>, vector<4x256xf32>
    %c239_i32 = arith.constant 239 : i32
    %51 = tpu.dynamic_rotate %3 by %c239_i32 dim 1 : vector<4x256xf32>, i32 -> vector<4x256xf32>
    %c240_i32_20 = arith.constant 240 : i32
    %52 = vector.broadcast %c240_i32_20 : i32 to vector<4x256xi32>
    %53 = arith.cmpi slt, %4, %52 : vector<4x256xi32>
    %c15_i32_21 = arith.constant 15 : i32
    %54 = vector.broadcast %c15_i32_21 : i32 to vector<4x256xi32>
    %55 = arith.cmpi slt, %6, %54 : vector<4x256xi32>
    %56 = arith.andi %53, %55 : vector<4x256xi1>
    %cst_22 = arith.constant 0.000000e+00 : f32
    %57 = vector.broadcast %cst_22 : f32 to vector<4x256xf32>
    %58 = arith.select %56, %51, %57 : vector<4x256xi1>, vector<4x256xf32>
    %59 = tpu.concatenate %14, %19, %27, %32, %3, %37, %45, %50, %58 in 0 : vector<4x256xf32>, vector<4x256xf32>, vector<4x256xf32>, vector<4x256xf32>, vector<4x256xf32>, vector<4x256xf32>, vector<4x256xf32>, vector<4x256xf32>, vector<4x256xf32> -> vector<36x256xf32>
    %60 = arith.truncf %59 : vector<36x256xf32> to vector<36x256xbf16>
    %c0_23 = arith.constant 0 : index
    %c0_24 = arith.constant 0 : index
    %61 = vector.load %arg2[%c0_23, %c0_24] : memref<4x36xbf16, #tpu.memory_space<vmem>>, vector<4x36xbf16>
    %cst_25 = arith.constant dense<0.000000e+00> : vector<4x256xf32>
    %62 = tpu.matmul %61, %60, %cst_25 {dimension_numbers = #tpu.dot_dimension_numbers<[1], [0], [0], [1], [0, 0, 1, 1], [], []>} : vector<4x36xbf16>, vector<36x256xbf16>, vector<4x256xf32> -> vector<4x256xf32>
    %c0_26 = arith.constant 0 : index
    %c0_27 = arith.constant 0 : index
    %63 = vector.load %arg3[%c0_26, %c0_27] : memref<4x1xf32, #tpu.memory_space<vmem>>, vector<4x1xf32>
    %64 = vector.broadcast %63 : vector<4x1xf32> to vector<4x256xf32>
    %65 = arith.addf %62, %64 : vector<4x256xf32>
    %cst_28 = arith.constant 0.000000e+00 : f32
    %66 = vector.broadcast %cst_28 : f32 to vector<4x256xf32>
    %67 = arith.maximumf %65, %66 : vector<4x256xf32>
    %68 = tpu.iota {dimensions = array<i32: 1>} : vector<4x256xi32>
    %c15_i32_29 = arith.constant 15 : i32
    %69 = vector.broadcast %c15_i32_29 : i32 to vector<4x256xi32>
    %70 = arith.andi %68, %69 : vector<4x256xi32>
    %c17_i32_30 = arith.constant 17 : i32
    %71 = tpu.dynamic_rotate %67 by %c17_i32_30 dim 1 : vector<4x256xf32>, i32 -> vector<4x256xf32>
    %c16_i32_31 = arith.constant 16 : i32
    %72 = vector.broadcast %c16_i32_31 : i32 to vector<4x256xi32>
    %73 = arith.cmpi sge, %68, %72 : vector<4x256xi32>
    %c1_i32_32 = arith.constant 1 : i32
    %74 = vector.broadcast %c1_i32_32 : i32 to vector<4x256xi32>
    %75 = arith.cmpi sge, %70, %74 : vector<4x256xi32>
    %76 = arith.andi %73, %75 : vector<4x256xi1>
    %cst_33 = arith.constant 0.000000e+00 : f32
    %77 = vector.broadcast %cst_33 : f32 to vector<4x256xf32>
    %78 = arith.select %76, %71, %77 : vector<4x256xi1>, vector<4x256xf32>
    %c16_i32_34 = arith.constant 16 : i32
    %79 = tpu.dynamic_rotate %67 by %c16_i32_34 dim 1 : vector<4x256xf32>, i32 -> vector<4x256xf32>
    %c16_i32_35 = arith.constant 16 : i32
    %80 = vector.broadcast %c16_i32_35 : i32 to vector<4x256xi32>
    %81 = arith.cmpi sge, %68, %80 : vector<4x256xi32>
    %cst_36 = arith.constant 0.000000e+00 : f32
    %82 = vector.broadcast %cst_36 : f32 to vector<4x256xf32>
    %83 = arith.select %81, %79, %82 : vector<4x256xi1>, vector<4x256xf32>
    %c15_i32_37 = arith.constant 15 : i32
    %84 = tpu.dynamic_rotate %67 by %c15_i32_37 dim 1 : vector<4x256xf32>, i32 -> vector<4x256xf32>
    %c16_i32_38 = arith.constant 16 : i32
    %85 = vector.broadcast %c16_i32_38 : i32 to vector<4x256xi32>
    %86 = arith.cmpi sge, %68, %85 : vector<4x256xi32>
    %c15_i32_39 = arith.constant 15 : i32
    %87 = vector.broadcast %c15_i32_39 : i32 to vector<4x256xi32>
    %88 = arith.cmpi slt, %70, %87 : vector<4x256xi32>
    %89 = arith.andi %86, %88 : vector<4x256xi1>
    %cst_40 = arith.constant 0.000000e+00 : f32
    %90 = vector.broadcast %cst_40 : f32 to vector<4x256xf32>
    %91 = arith.select %89, %84, %90 : vector<4x256xi1>, vector<4x256xf32>
    %c1_i32_41 = arith.constant 1 : i32
    %92 = tpu.dynamic_rotate %67 by %c1_i32_41 dim 1 : vector<4x256xf32>, i32 -> vector<4x256xf32>
    %c1_i32_42 = arith.constant 1 : i32
    %93 = vector.broadcast %c1_i32_42 : i32 to vector<4x256xi32>
    %94 = arith.cmpi sge, %70, %93 : vector<4x256xi32>
    %cst_43 = arith.constant 0.000000e+00 : f32
    %95 = vector.broadcast %cst_43 : f32 to vector<4x256xf32>
    %96 = arith.select %94, %92, %95 : vector<4x256xi1>, vector<4x256xf32>
    %c255_i32_44 = arith.constant 255 : i32
    %97 = tpu.dynamic_rotate %67 by %c255_i32_44 dim 1 : vector<4x256xf32>, i32 -> vector<4x256xf32>
    %c15_i32_45 = arith.constant 15 : i32
    %98 = vector.broadcast %c15_i32_45 : i32 to vector<4x256xi32>
    %99 = arith.cmpi slt, %70, %98 : vector<4x256xi32>
    %cst_46 = arith.constant 0.000000e+00 : f32
    %100 = vector.broadcast %cst_46 : f32 to vector<4x256xf32>
    %101 = arith.select %99, %97, %100 : vector<4x256xi1>, vector<4x256xf32>
    %c241_i32_47 = arith.constant 241 : i32
    %102 = tpu.dynamic_rotate %67 by %c241_i32_47 dim 1 : vector<4x256xf32>, i32 -> vector<4x256xf32>
    %c240_i32_48 = arith.constant 240 : i32
    %103 = vector.broadcast %c240_i32_48 : i32 to vector<4x256xi32>
    %104 = arith.cmpi slt, %68, %103 : vector<4x256xi32>
    %c1_i32_49 = arith.constant 1 : i32
    %105 = vector.broadcast %c1_i32_49 : i32 to vector<4x256xi32>
    %106 = arith.cmpi sge, %70, %105 : vector<4x256xi32>
    %107 = arith.andi %104, %106 : vector<4x256xi1>
    %cst_50 = arith.constant 0.000000e+00 : f32
    %108 = vector.broadcast %cst_50 : f32 to vector<4x256xf32>
    %109 = arith.select %107, %102, %108 : vector<4x256xi1>, vector<4x256xf32>
    %c240_i32_51 = arith.constant 240 : i32
    %110 = tpu.dynamic_rotate %67 by %c240_i32_51 dim 1 : vector<4x256xf32>, i32 -> vector<4x256xf32>
    %c240_i32_52 = arith.constant 240 : i32
    %111 = vector.broadcast %c240_i32_52 : i32 to vector<4x256xi32>
    %112 = arith.cmpi slt, %68, %111 : vector<4x256xi32>
    %cst_53 = arith.constant 0.000000e+00 : f32
    %113 = vector.broadcast %cst_53 : f32 to vector<4x256xf32>
    %114 = arith.select %112, %110, %113 : vector<4x256xi1>, vector<4x256xf32>
    %c239_i32_54 = arith.constant 239 : i32
    %115 = tpu.dynamic_rotate %67 by %c239_i32_54 dim 1 : vector<4x256xf32>, i32 -> vector<4x256xf32>
    %c240_i32_55 = arith.constant 240 : i32
    %116 = vector.broadcast %c240_i32_55 : i32 to vector<4x256xi32>
    %117 = arith.cmpi slt, %68, %116 : vector<4x256xi32>
    %c15_i32_56 = arith.constant 15 : i32
    %118 = vector.broadcast %c15_i32_56 : i32 to vector<4x256xi32>
    %119 = arith.cmpi slt, %70, %118 : vector<4x256xi32>
    %120 = arith.andi %117, %119 : vector<4x256xi1>
    %cst_57 = arith.constant 0.000000e+00 : f32
    %121 = vector.broadcast %cst_57 : f32 to vector<4x256xf32>
    %122 = arith.select %120, %115, %121 : vector<4x256xi1>, vector<4x256xf32>
    %123 = tpu.concatenate %78, %83, %91, %96, %67, %101, %109, %114, %122, %1 in 0 : vector<4x256xf32>, vector<4x256xf32>, vector<4x256xf32>, vector<4x256xf32>, vector<4x256xf32>, vector<4x256xf32>, vector<4x256xf32>, vector<4x256xf32>, vector<4x256xf32>, vector<4x256xf32> -> vector<40x256xf32>
    %124 = arith.truncf %123 : vector<40x256xf32> to vector<40x256xbf16>
    %c0_58 = arith.constant 0 : index
    %c0_59 = arith.constant 0 : index
    %125 = vector.load %arg4[%c0_58, %c0_59] : memref<8x40xbf16, #tpu.memory_space<vmem>>, vector<8x40xbf16>
    %cst_60 = arith.constant dense<0.000000e+00> : vector<8x256xf32>
    %126 = tpu.matmul %125, %124, %cst_60 {dimension_numbers = #tpu.dot_dimension_numbers<[1], [0], [0], [1], [0, 0, 1, 1], [], []>} : vector<8x40xbf16>, vector<40x256xbf16>, vector<8x256xf32> -> vector<8x256xf32>
    %c0_61 = arith.constant 0 : index
    %c0_62 = arith.constant 0 : index
    %127 = vector.load %arg5[%c0_61, %c0_62] : memref<8x1xf32, #tpu.memory_space<vmem>>, vector<8x1xf32>
    %128 = vector.broadcast %127 : vector<8x1xf32> to vector<8x256xf32>
    %129 = arith.addf %126, %128 : vector<8x256xf32>
    %c0_63 = arith.constant 0 : index
    %c0_64 = arith.constant 0 : index
    %c0_65 = arith.constant 0 : index
    %130 = vector.load %arg6[%c0_63, %c0_64, %c0_65] : memref<1x8x256xf32, #tpu.memory_space<vmem>>, vector<1x8x256xf32>
    %131 = vector.shape_cast %130 : vector<1x8x256xf32> to vector<8x256xf32>
    %132 = vector.shape_cast %129 : vector<8x256xf32> to vector<1x8x256xf32>
    tpu.vector_store %arg6[%c0_63, %c0_64, %c0_65], %132 {strides = array<i32>} : memref<1x8x256xf32, #tpu.memory_space<vmem>>, vector<1x8x256xf32>,
    return
  }
  func.func @transform_0(%arg0: i32) -> (i32, i32, i32) {
    %c0_i32 = arith.constant 0 : i32
    %c0_i32_0 = arith.constant 0 : i32
    %c0_i32_1 = arith.constant 0 : i32
    return %arg0, %c0_i32, %c0_i32_0 : i32, i32, i32
  }
  func.func @transform_1(%arg0: i32) -> (i32, i32) {
    %c0_i32 = arith.constant 0 : i32
    %c0_i32_0 = arith.constant 0 : i32
    %c0_i32_1 = arith.constant 0 : i32
    return %c0_i32, %c0_i32_0 : i32, i32
  }
  func.func @transform_2(%arg0: i32) -> (i32, i32) {
    %c0_i32 = arith.constant 0 : i32
    %c0_i32_0 = arith.constant 0 : i32
    %c0_i32_1 = arith.constant 0 : i32
    return %c0_i32, %c0_i32_0 : i32, i32
  }
  func.func @transform_3(%arg0: i32) -> (i32, i32) {
    %c0_i32 = arith.constant 0 : i32
    %c0_i32_0 = arith.constant 0 : i32
    %c0_i32_1 = arith.constant 0 : i32
    return %c0_i32, %c0_i32_0 : i32, i32
  }
  func.func @transform_4(%arg0: i32) -> (i32, i32) {
    %c0_i32 = arith.constant 0 : i32
    %c0_i32_0 = arith.constant 0 : i32
    %c0_i32_1 = arith.constant 0 : i32
    return %c0_i32, %c0_i32_0 : i32, i32
  }
  func.func @transform_5(%arg0: i32) -> (i32, i32, i32) {
    %c0_i32 = arith.constant 0 : i32
    %c0_i32_0 = arith.constant 0 : i32
    %c0_i32_1 = arith.constant 0 : i32
    return %arg0, %c0_i32, %c0_i32_0 : i32, i32, i32
  }
}

</mosaic_0001>

<llo_original>
// kernel: tpu_custom_call.1
$region0: #{tpu_custom_call.1}
  #allocation0 [shape = 'u32[]', space=smem, size = 0x4, offset = 0x4, fixed_abs, tag = 'smem constant byte address 0x4 - core index']
  #allocation1 [shape = 'u32[144,128]{1,0:T(1,128)}', space=vmem, size = 0x12000, scoped, tag = 'internal scratch']
  %s0 = inlined_call_operand.hbm [shape: f32[2,4,256], index: 0, kind: input, shape index: {}]
  %s1 = inlined_call_operand.vmem [shape: bf16[4,36], index: 1, kind: input, shape index: {}]
  %s2 = inlined_call_operand.vmem [shape: f32[4,1], index: 2, kind: input, shape index: {}]
  %s3 = inlined_call_operand.vmem [shape: bf16[8,40], index: 3, kind: input, shape index: {}]
  %s4 = inlined_call_operand.vmem [shape: f32[8,1], index: 4, kind: input, shape index: {}]
  %s5 = inlined_call_operand.hbm [shape: f32[2,8,256], index: 5, kind: output, shape index: {}]
  %s6 = sld [smem:[#allocation0]]
  $region57: #{tpu_custom_call.1} parent=0
    _
  %s8 = ssub.s32 1, %s6
  %s9 = scalar_select 0, %s8, %s6
  $region1: #{tpu_custom_call.1} parent=0
    #allocation2 [shape = 'u8[8192]{0}', space=vmem, size = 0x2000, scoped, tag = 'input window, operand 0']
    #allocation3 [shape = 's32[2]{0}', space=sflag, size = 0x8, scoped, tag = 'scoped memory for tpu_custom_call.1']
    #allocation4 [shape = 's32[2]{0}', space=sflag, size = 0x8, scoped, tag = 'scoped memory for tpu_custom_call.1']
    #allocation5 [shape = 'u8[16384]{0}', space=vmem, size = 0x4000, scoped, tag = 'output window, operand 0']
    %10 = vsyncpa [#allocation3], 0
    %s11 = scalar_lea.sflag [#allocation3], 1
    %12 = vsyncpa %s11, 0
    %13 = vsyncpa [#allocation4], 0
    %s14 = scalar_lea.sflag [#allocation4], 1
    %15 = vsyncpa %s14, 0
    loop: start=0, step=1, limit=4
    $region2: #{tpu_custom_call.1} parent=1 // loop_pre_header
      _
    $region3: #{tpu_custom_call.1} parent=1 // loop_header
      %s17 = sphi 0, %s21
      %p18 = scmp.ge.s32.totalorder %s17, 4
      %s27 = sphi 0, %s29
      %s30 = sphi 0, %s27
      %s31 = sphi 0, %s30
      %s47 = sphi 0, %s31
      %s51 = sphi 0, %s51
      %s53 = sphi 0, %s51
      %s54 = sphi 0, %s53
      %s68 = sphi 0, %s54
      %s72 = sphi 0, %s72
      %s74 = sphi 0, %s72
      %s75 = sphi 0, %s74
      %s89 = sphi 0, %s75
      %s93 = sphi 0, %s93
      %s95 = sphi 0, %s93
      %s96 = sphi 0, %s95
      %s110 = sphi 0, %s96
      %s114 = sphi 0, %s114
      %s116 = sphi 0, %s114
      %s117 = sphi 0, %s116
      %s131 = sphi 0, %s117
      %s137 = sphi 0, %s139
      %s140 = sphi 0, %s137
      %s141 = sphi 0, %s140
      %s157 = sphi 0, %s141
    $region4: #{tpu_custom_call.1} parent=1 // loop_header_branch
      %20 = sbr.rel (%p18) target = $region8
    $region5: #{tpu_custom_call.1} parent=1 // loop_body
      %s22 = ssub.s32 %s17, 1
      %s23 = ssub.s32 %s17, 2
      %s24 = sadd.s32 %s17, 1
      %s25 = ssub.s32 %s17, %s24
      %p26 = scmp.eq.s32.totalorder %s25, 0
      %s28 = sadd.s32 %s27, 1
      %s29 = scalar_select %p26, %s27, %s28
      %p32 = pneg %p26
      %p33 = scmp.eq.s32.totalorder %s17, 1
      %p34 = por %p32, %p33
      %p35 = scmp.ne.s32.totalorder %s27, %s30
      %p36 = scmp.eq.s32.totalorder %s17, 0
      %p37 = por %p35, %p36
      %p38 = scmp.ne.s32.totalorder %s27, %s30
      %p39 = scmp.eq.s32.totalorder %s22, 1
      %p40 = por %p38, %p39
      %p41 = scmp.ne.s32.totalorder %s30, %s31
      %p42 = scmp.eq.s32.totalorder %s22, 0
      %p43 = por %p41, %p42
      %p44 = scmp.ne.s32.totalorder %s30, %s31
      %p45 = scmp.eq.s32.totalorder %s23, 1
      %p46 = por %p44, %p45
      %p48 = scmp.ne.s32.totalorder %s31, %s47
      %p49 = scmp.eq.s32.totalorder %s23, 0
      %p50 = por %p48, %p49
      %s52 = sadd.s32 %s51, 1
      %p55 = scmp.eq.s32.totalorder %s17, 1
      %p56 = scmp.ne.s32.totalorder %s51, %s53
      %p57 = scmp.eq.s32.totalorder %s17, 0
      %p58 = por %p56, %p57
      %p59 = scmp.ne.s32.totalorder %s51, %s53
      %p60 = scmp.eq.s32.totalorder %s22, 1
      %p61 = por %p59, %p60
      %p62 = scmp.ne.s32.totalorder %s53, %s54
      %p63 = scmp.eq.s32.totalorder %s22, 0
      %p64 = por %p62, %p63
      %p65 = scmp.ne.s32.totalorder %s53, %s54
      %p66 = scmp.eq.s32.totalorder %s23, 1
      %p67 = por %p65, %p66
      %p69 = scmp.ne.s32.totalorder %s54, %s68
      %p70 = scmp.eq.s32.totalorder %s23, 0
      %p71 = por %p69, %p70
      %s73 = sadd.s32 %s72, 1
      %p76 = scmp.eq.s32.totalorder %s17, 1
      %p77 = scmp.ne.s32.totalorder %s72, %s74
      %p78 = scmp.eq.s32.totalorder %s17, 0
      %p79 = por %p77, %p78
      %p80 = scmp.ne.s32.totalorder %s72, %s74
      %p81 = scmp.eq.s32.totalorder %s22, 1
      %p82 = por %p80, %p81
      %p83 = scmp.ne.s32.totalorder %s74, %s75
      %p84 = scmp.eq.s32.totalorder %s22, 0
      %p85 = por %p83, %p84
      %p86 = scmp.ne.s32.totalorder %s74, %s75
      %p87 = scmp.eq.s32.totalorder %s23, 1
      %p88 = por %p86, %p87
      %p90 = scmp.ne.s32.totalorder %s75, %s89
      %p91 = scmp.eq.s32.totalorder %s23, 0
      %p92 = por %p90, %p91
      %s94 = sadd.s32 %s93, 1
      %p97 = scmp.eq.s32.totalorder %s17, 1
      %p98 = scmp.ne.s32.totalorder %s93, %s95
      %p99 = scmp.eq.s32.totalorder %s17, 0
      %p100 = por %p98, %p99
      %p101 = scmp.ne.s32.totalorder %s93, %s95
      %p102 = scmp.eq.s32.totalorder %s22, 1
      %p103 = por %p101, %p102
      %p104 = scmp.ne.s32.totalorder %s95, %s96
      %p105 = scmp.eq.s32.totalorder %s22, 0
      %p106 = por %p104, %p105
      %p107 = scmp.ne.s32.totalorder %s95, %s96
      %p108 = scmp.eq.s32.totalorder %s23, 1
      %p109 = por %p107, %p108
      %p111 = scmp.ne.s32.totalorder %s96, %s110
      %p112 = scmp.eq.s32.totalorder %s23, 0
      %p113 = por %p111, %p112
      %s115 = sadd.s32 %s114, 1
      %p118 = scmp.eq.s32.totalorder %s17, 1
      %p119 = scmp.ne.s32.totalorder %s114, %s116
      %p120 = scmp.eq.s32.totalorder %s17, 0
      %p121 = por %p119, %p120
      %p122 = scmp.ne.s32.totalorder %s114, %s116
      %p123 = scmp.eq.s32.totalorder %s22, 1
      %p124 = por %p122, %p123
      %p125 = scmp.ne.s32.totalorder %s116, %s117
      %p126 = scmp.eq.s32.totalorder %s22, 0
      %p127 = por %p125, %p126
      %p128 = scmp.ne.s32.totalorder %s116, %s117
      %p129 = scmp.eq.s32.totalorder %s23, 1
      %p130 = por %p128, %p129
      %p132 = scmp.ne.s32.totalorder %s117, %s131
      %p133 = scmp.eq.s32.totalorder %s23, 0
      %p134 = por %p132, %p133
      %s135 = ssub.s32 %s17, %s24
      %p136 = scmp.eq.s32.totalorder %s135, 0
      %s138 = sadd.s32 %s137, 1
      %s139 = scalar_select %p136, %s137, %s138
      %p142 = pneg %p136
      %p143 = scmp.eq.s32.totalorder %s17, 1
      %p144 = por %p142, %p143
      %p145 = scmp.ne.s32.totalorder %s137, %s140
      %p146 = scmp.eq.s32.totalorder %s17, 0
      %p147 = por %p145, %p146
      %p148 = scmp.ne.s32.totalorder %s137, %s140
      %p149 = scmp.eq.s32.totalorder %s22, 1
      %p150 = por %p148, %p149
      %p151 = scmp.ne.s32.totalorder %s140, %s141
      %p152 = scmp.eq.s32.totalorder %s22, 0
      %p153 = por %p151, %p152
      %p154 = scmp.ne.s32.totalorder %s140, %s141
      %p155 = scmp.eq.s32.totalorder %s23, 1
      %p156 = por %p154, %p155
      %p158 = scmp.ne.s32.totalorder %s141, %s157
      %p159 = scmp.eq.s32.totalorder %s23, 0
      %p160 = por %p158, %p159
      %p161 = scmp.le.s32.totalorder 1, %s17
      %p162 = scmp.lt.s32.totalorder %s17, 3
      %p163 = pnand %p161, %p162
      %p164 = pneg %p163
      // Predicated region
      $region9: #{tpu_custom_call.1} parent=5 // pred_check
        _
      $region10: #{tpu_custom_call.1} parent=5 // pred_check_branch
        %166 = sbr.rel (%p163) target = $region12
      $region11: #{tpu_custom_call.1} parent=5 // pred_region
        %s167 = ssub.s32 %s17, 1
        // Predicated region
        $region13: #{tpu_custom_call.1} parent=11 // pred_check
          %p168 = pneg %p64
        $region14: #{tpu_custom_call.1} parent=11 // pred_check_branch
          %170 = sbr.rel (%p168) target = $region16
        $region15: #{tpu_custom_call.1} parent=11 // pred_region
          _
        $region16: #{tpu_custom_call.1} parent=11 // pred_fallthru
          _
        // Predicated region
        $region17: #{tpu_custom_call.1} parent=11 // pred_check
          %p171 = pneg %p85
        $region18: #{tpu_custom_call.1} parent=11 // pred_check_branch
          %173 = sbr.rel (%p171) target = $region20
        $region19: #{tpu_custom_call.1} parent=11 // pred_region
          _
        $region20: #{tpu_custom_call.1} parent=11 // pred_fallthru
          _
        // Predicated region
        $region21: #{tpu_custom_call.1} parent=11 // pred_check
          %p174 = pneg %p106
        $region22: #{tpu_custom_call.1} parent=11 // pred_check_branch
          %176 = sbr.rel (%p174) target = $region24
        $region23: #{tpu_custom_call.1} parent=11 // pred_region
          _
        $region24: #{tpu_custom_call.1} parent=11 // pred_fallthru
          _
        // Predicated region
        $region25: #{tpu_custom_call.1} parent=11 // pred_check
          %p177 = pneg %p127
        $region26: #{tpu_custom_call.1} parent=11 // pred_check_branch
          %179 = sbr.rel (%p177) target = $region28
        $region27: #{tpu_custom_call.1} parent=11 // pred_region
          _
        $region28: #{tpu_custom_call.1} parent=11 // pred_fallthru
          _
      $region12: #{tpu_custom_call.1} parent=5 // pred_fallthru
        _
      %p180 = scmp.lt.s32.totalorder %s17, 2
      // Predicated region
      $region29: #{tpu_custom_call.1} parent=5 // pred_check
        %p181 = pneg %p180
      $region30: #{tpu_custom_call.1} parent=5 // pred_check_branch
        %183 = sbr.rel (%p181) target = $region32
      $region31: #{tpu_custom_call.1} parent=5 // pred_region
        // Predicated region
        $region33: #{tpu_custom_call.1} parent=31 // pred_check
          %p184 = pneg %p37
        $region34: #{tpu_custom_call.1} parent=31 // pred_check_branch
          %186 = sbr.rel (%p184) target = $region36
        $region35: #{tpu_custom_call.1} parent=31 // pred_region
          %s187 = sand.u32 %s27, 1
          %s188 = scalar_lea.sflag [#allocation3], %s187
          %s189 = sand.u32 %s27, 1
          %s190 = smul.addr %s189, 8
          %s191 = scalar_lea.vmem [#allocation2], %s190
          %s193 = ssub.s32 128, 128
          %194 = vsyncadd %s188, %s193
          %s195 = smul.addr %s17, 2
          %s196 = smul.addr %s195, 64
          %s197 = scalar_lea.hbm %s0, %s196
          %s199 = sshll.u32 %s191, 4
          %s200 = int_to_ptr.vmem [resolvable:$true] %s199
          %202 = dma.hbm_to_vmem [thread:$0]  %s197, 128, %s200, %s188
        $region36: #{tpu_custom_call.1} parent=31 // pred_fallthru
          _
      $region32: #{tpu_custom_call.1} parent=5 // pred_fallthru
        _
      %p203 = scmp.le.s32.totalorder 1, %s17
      %p204 = scmp.lt.s32.totalorder %s17, 3
      %p205 = pnand %p203, %p204
      %p206 = pneg %p205
      // Predicated region
      $region37: #{tpu_custom_call.1} parent=5 // pred_check
        _
      $region38: #{tpu_custom_call.1} parent=5 // pred_check_branch
        %208 = sbr.rel (%p205) target = $region40
      $region39: #{tpu_custom_call.1} parent=5 // pred_region
        %s209 = ssub.s32 %s17, 1
        %s210 = sand.u32 %s30, 1
        %s211 = scalar_lea.sflag [#allocation3], %s210
        %s212 = sand.u32 %s30, 1
        %s213 = smul.addr %s212, 8
        %s214 = scalar_lea.vmem [#allocation2], %s213
        // Predicated region
        $region41: #{tpu_custom_call.1} parent=39 // pred_check
          %p215 = pneg %p43
        $region42: #{tpu_custom_call.1} parent=39 // pred_check_branch
          %217 = sbr.rel (%p215) target = $region44
        $region43: #{tpu_custom_call.1} parent=39 // pred_region
          %218 = dma.done %s211, 128
        $region44: #{tpu_custom_call.1} parent=39 // pred_fallthru
          _
        %s219 = sand.u32 %s30, 1
        %s220 = scalar_lea.sflag [#allocation3], %s219
        %s221 = sand.u32 %s30, 1
        %s222 = smul.addr %s221, 8
        %s223 = scalar_lea.vmem [#allocation2], %s222
        %p224 = pneg %p43
        %p225 = pneg %p40
        %p226 = pneg %p64
        %p227 = pneg %p61
        %p228 = pneg %p85
        %p229 = pneg %p82
        %p230 = pneg %p106
        %p231 = pneg %p103
        %p232 = pneg %p127
        %p233 = pneg %p124
        %p234 = pneg %p153
        %p235 = pneg %p150
        %s236 = sand.u32 %s140, 1
        %s237 = scalar_lea.sflag [#allocation4], %s236
        %s238 = sand.u32 %s140, 1
        %s239 = smul.addr %s238, 16
        %s240 = scalar_lea.vmem [#allocation5], %s239
        %v242 = vld [vmem:[%s214] sm:$0xff]
        %v243 = vmax.f32 %v242, 0.0
        %v244 = vlaneseq
        %v245 = vand.u32 %v244, 127
        %v246 = vadd.s32 %v245, 128
        %v247 = vand.u32 %v245, 15
        %v248 = vand.u32 %v246, 15
        %v250 = vcombine.high %v243, %v243
        %252 = vrot.lane.b32.xlu0 %v243, 17
        %v253 = vpop.permute.xlu0 %252
        %254 = vrot.lane.b32.xlu0 %v250, 17
        %v255 = vpop.permute.xlu0 %254
        %vm256 = vcmp.lt.s32.totalorder %v245, 17
        %v257 = vsel %vm256, %v253, %v255
        %v258 = vsel %vm256, %v255, %v253
        %vm259 = vcmp.ge.s32.totalorder %v245, 16
        %vm260 = vcmp.ge.s32.totalorder %v246, 16
        %vm261 = vcmp.ge.s32.totalorder %v247, 1
        %vm262 = vcmp.ge.s32.totalorder %v248, 1
        %vm263 = vmand %vm259, %vm261
        %vm264 = vmand %vm260, %vm262
        %v265 = vsel %vm263, %v258, 0.0
        %v266 = vsel %vm264, %v257, 0.0
        %267 = vrot.lane.b32.xlu0 %v243, 16
        %v268 = vpop.permute.xlu0 %267
        %269 = vrot.lane.b32.xlu0 %v250, 16
        %v270 = vpop.permute.xlu0 %269
        %vm271 = vcmp.lt.s32.totalorder %v245, 16
        %v272 = vsel %vm271, %v268, %v270
        %v273 = vsel %vm271, %v270, %v268
        %v274 = vsel %vm259, %v273, 0.0
        %v275 = vsel %vm260, %v272, 0.0
        %276 = vrot.lane.b32.xlu0 %v243, 15
        %v277 = vpop.permute.xlu0 %276
        %278 = vrot.lane.b32.xlu0 %v250, 15
        %v279 = vpop.permute.xlu0 %278
        %vm280 = vcmp.lt.s32.totalorder %v245, 15
        %v281 = vsel %vm280, %v277, %v279
        %v282 = vsel %vm280, %v279, %v277
        %vm283 = vcmp.lt.s32.totalorder %v247, 15
        %vm284 = vcmp.lt.s32.totalorder %v248, 15
        %vm285 = vmand %vm259, %vm283
        %vm286 = vmand %vm260, %vm284
        %v287 = vsel %vm285, %v282, 0.0
        %v288 = vsel %vm286, %v281, 0.0
        %289 = vrot.lane.b32.xlu0 %v243, 1
        %v290 = vpop.permute.xlu0 %289
        %291 = vrot.lane.b32.xlu0 %v250, 1
        %v292 = vpop.permute.xlu0 %291
        %vm293 = vcmp.lt.s32.totalorder %v245, 1
        %v294 = vsel %vm293, %v290, %v292
        %v295 = vsel %vm293, %v292, %v290
        %v296 = vsel %vm261, %v295, 0.0
        %v297 = vsel %vm262, %v294, 0.0
        %298 = vrot.lane.b32.xlu0 %v243, 127
        %v299 = vpop.permute.xlu0 %298
        %300 = vrot.lane.b32.xlu0 %v250, 127
        %v301 = vpop.permute.xlu0 %300
        %vm302 = vcmp.lt.s32.totalorder %v245, 127
        %v303 = vsel %vm302, %v299, %v301
        %v304 = vsel %vm302, %v301, %v299
        %v305 = vsel %vm283, %v303, 0.0
        %v306 = vsel %vm284, %v304, 0.0
        %307 = vrot.lane.b32.xlu0 %v243, 113
        %v308 = vpop.permute.xlu0 %307
        %309 = vrot.lane.b32.xlu0 %v250, 113
        %v310 = vpop.permute.xlu0 %309
        %vm311 = vcmp.lt.s32.totalorder %v245, 113
        %v312 = vsel %vm311, %v308, %v310
        %v313 = vsel %vm311, %v310, %v308
        %vm314 = vcmp.lt.s32.totalorder %v245, 240
        %vm315 = vcmp.lt.s32.totalorder %v246, 240
        %vm316 = vmand %vm314, %vm261
        %vm317 = vmand %vm315, %vm262
        %v318 = vsel %vm316, %v312, 0.0
        %v319 = vsel %vm317, %v313, 0.0
        %320 = vrot.lane.b32.xlu0 %v243, 112
        %v321 = vpop.permute.xlu0 %320
        %322 = vrot.lane.b32.xlu0 %v250, 112
        %v323 = vpop.permute.xlu0 %322
        %vm324 = vcmp.lt.s32.totalorder %v245, 112
        %v325 = vsel %vm324, %v321, %v323
        %v326 = vsel %vm324, %v323, %v321
        %v327 = vsel %vm314, %v325, 0.0
        %v328 = vsel %vm315, %v326, 0.0
        %329 = vrot.lane.b32.xlu0 %v243, 111
        %v330 = vpop.permute.xlu0 %329
        %331 = vrot.lane.b32.xlu0 %v250, 111
        %v332 = vpop.permute.xlu0 %331
        %vm333 = vcmp.lt.s32.totalorder %v245, 111
        %v334 = vsel %vm333, %v330, %v332
        %v335 = vsel %vm333, %v332, %v330
        %vm336 = vmand %vm314, %vm283
        %vm337 = vmand %vm315, %vm284
        %v338 = vsel %vm336, %v334, 0.0
        %v339 = vsel %vm337, %v335, 0.0
        %v342 = vrot.slane %v274, 4
        %v343 = vrot.slane %v275, 4
        %v348 = vrot.slane %v296, 4
        %v349 = vrot.slane %v297, 4
        %v354 = vrot.slane %v305, 4
        %v355 = vrot.slane %v306, 4
        %v360 = vrot.slane %v327, 4
        %v361 = vrot.slane %v328, 4
        %vm364 = vcmask 1043456
        %v365 = vsel %vm364, %v265, %v342
        %v366 = vsel %vm364, %v266, %v343
        %v367 = vsel %vm364, %v287, %v348
        %v368 = vsel %vm364, %v288, %v349
        %v369 = vsel %vm364, %v243, %v354
        %v370 = vsel %vm364, %v250, %v355
        %v371 = vsel %vm364, %v318, %v360
        %v372 = vsel %vm364, %v319, %v361
        %v373 = vpack.c.bf16 %v367, %v365
        %v374 = vpack.c.bf16 %v368, %v366
        %v375 = vpack.c.bf16 %v371, %v369
        %v376 = vpack.c.bf16 %v372, %v370
        %v377 = vpack.c.bf16 %v338, %v338
        %v378 = vpack.c.bf16 %v339, %v339
        %v379 = vld [vmem:[%s1] sm:$0x3]
        %v380 = vld [vmem:[%s2] sm:$0xf]
        %382 = vset.pattern.permute.xlu0 0
        %383 = vperm.xlu0 %382, %v380
        %v384 = vpop.permute.xlu0 %383
        %vm386 = vcmask 293888
        %v388 = vsel %vm386, %v379, 0
        %vm390 = vcmask 1041408
        %v392 = vsel %vm390, %v377, 0
        %v395 = vsel %vm390, %v378, 0
        %397 = vmatprep.subr.bf16.mxu0 %v374
        %398 = vmatpush1.bf16.msra.mxu0 %v373
        %399 = vmatprep.subr.bf16.mxu0 %v376
        %400 = vmatpush1.bf16.msra.mxu0 %v375
        %401 = vmatprep.subr.bf16.mxu0 %v395
        %402 = vmatpush1.bf16.msra.mxu0 %v392
        %403 = vmatprep.subr.bf16.mxu0 0
        %404 = vmatpush1.bf16.msra.mxu0 0
        %405 = vmatprep.subr.bf16.mxu0 0
        %406 = vmatpush1.bf16.msra.mxu0 0
        %407 = vmatprep.subr.bf16.mxu0 0
        %408 = vmatpush1.bf16.msra.mxu0 0
        %409 = vmatprep.subr.bf16.mxu0 0
        %410 = vmatpush1.bf16.msra.mxu0 0
        %411 = vmatprep.subr.bf16.mxu0 0
        %412 = vmatpush1.bf16.msra.mxu0 0
        %413 = vmatprep.subr.bf16.mxu0 0
        %414 = vmatpush1.bf16.msra.mxu0 0
        %415 = vmatprep.subr.bf16.mxu0 0
        %416 = vmatpush1.bf16.msra.mxu0 0
        %417 = vmatprep.subr.bf16.mxu0 0
        %418 = vmatpush1.bf16.msra.mxu0 0
        %419 = vmatprep.subr.bf16.mxu0 0
        %420 = vmatpush1.bf16.msra.mxu0 0
        %421 = vmatprep.subr.bf16.mxu0 0
        %422 = vmatpush1.bf16.msra.mxu0 0
        %423 = vmatprep.subr.bf16.mxu0 0
        %424 = vmatpush1.bf16.msra.mxu0 0
        %425 = vmatprep.subr.bf16.mxu0 0
        %426 = vmatpush1.bf16.msra.mxu0 0
        %427 = vmatprep.subr.bf16.mxu0 0
        %428 = vmatpush1.bf16.msra.mxu0 0
        %429 = vmatprep.mubr.bf16.mxu0 0
        %430 = vmatmul.mubr.bf16.gmra.mrb[0].mxu0 %v388
        %v431 = vpop.f32.mrb[0].mxu0
        %v432 = vadd.f32 %v384, %v431
        %v433 = vpop.f32.mrb[0].mxu0
        %v434 = vadd.f32 %v384, %v433
        %v435 = vpop.f32.mrb[0].mxu0
        %v436 = vpop.f32.mrb[0].mxu0
        %437 = vdwg.mxu0
        %v438 = vmax.f32 %v432, 0.0
        %v439 = vmax.f32 %v434, 0.0
        %440 = vrot.lane.b32.xlu0 %v438, 17
        %v441 = vpop.permute.xlu0 %440
        %442 = vrot.lane.b32.xlu0 %v439, 17
        %v443 = vpop.permute.xlu0 %442
        %v444 = vsel %vm256, %v441, %v443
        %v445 = vsel %vm256, %v443, %v441
        %v446 = vsel %vm263, %v445, 0.0
        %v447 = vsel %vm264, %v444, 0.0
        %448 = vrot.lane.b32.xlu0 %v438, 16
        %v449 = vpop.permute.xlu0 %448
        %450 = vrot.lane.b32.xlu0 %v439, 16
        %v451 = vpop.permute.xlu0 %450
        %v452 = vsel %vm271, %v449, %v451
        %v453 = vsel %vm271, %v451, %v449
        %v454 = vsel %vm259, %v453, 0.0
        %v455 = vsel %vm260, %v452, 0.0
        %456 = vrot.lane.b32.xlu0 %v438, 15
        %v457 = vpop.permute.xlu0 %456
        %458 = vrot.lane.b32.xlu0 %v439, 15
        %v459 = vpop.permute.xlu0 %458
        %v460 = vsel %vm280, %v457, %v459
        %v461 = vsel %vm280, %v459, %v457
        %v462 = vsel %vm285, %v461, 0.0
        %v463 = vsel %vm286, %v460, 0.0
        %464 = vrot.lane.b32.xlu0 %v438, 1
        %v465 = vpop.permute.xlu0 %464
        %466 = vrot.lane.b32.xlu0 %v439, 1
        %v467 = vpop.permute.xlu0 %466
        %v468 = vsel %vm293, %v465, %v467
        %v469 = vsel %vm293, %v467, %v465
        %v470 = vsel %vm261, %v469, 0.0
        %v471 = vsel %vm262, %v468, 0.0
        %472 = vrot.lane.b32.xlu0 %v438, 127
        %v473 = vpop.permute.xlu0 %472
        %474 = vrot.lane.b32.xlu0 %v439, 127
        %v475 = vpop.permute.xlu0 %474
        %v476 = vsel %vm302, %v473, %v475
        %v477 = vsel %vm302, %v475, %v473
        %v478 = vsel %vm283, %v476, 0.0
        %v479 = vsel %vm284, %v477, 0.0
        %480 = vrot.lane.b32.xlu0 %v438, 113
        %v481 = vpop.permute.xlu0 %480
        %482 = vrot.lane.b32.xlu0 %v439, 113
        %v483 = vpop.permute.xlu0 %482
        %v484 = vsel %vm311, %v481, %v483
        %v485 = vsel %vm311, %v483, %v481
        %v486 = vsel %vm316, %v484, 0.0
        %v487 = vsel %vm317, %v485, 0.0
        %488 = vrot.lane.b32.xlu0 %v438, 112
        %v489 = vpop.permute.xlu0 %488
        %490 = vrot.lane.b32.xlu0 %v439, 112
        %v491 = vpop.permute.xlu0 %490
        %v492 = vsel %vm324, %v489, %v491
        %v493 = vsel %vm324, %v491, %v489
        %v494 = vsel %vm314, %v492, 0.0
        %v495 = vsel %vm315, %v493, 0.0
        %496 = vrot.lane.b32.xlu0 %v438, 111
        %v497 = vpop.permute.xlu0 %496
        %498 = vrot.lane.b32.xlu0 %v439, 111
        %v499 = vpop.permute.xlu0 %498
        %v500 = vsel %vm333, %v497, %v499
        %v501 = vsel %vm333, %v499, %v497
        %v502 = vsel %vm336, %v500, 0.0
        %v503 = vsel %vm337, %v501, 0.0
        %v506 = vrot.slane %v454, 4
        %v507 = vrot.slane %v455, 4
        %v512 = vrot.slane %v470, 4
        %v513 = vrot.slane %v471, 4
        %v518 = vrot.slane %v478, 4
        %v519 = vrot.slane %v479, 4
        %v524 = vrot.slane %v494, 4
        %v525 = vrot.slane %v495, 4
        %v529 = vcombine.low %v242, %v242
        %v531 = vsel %vm364, %v446, %v506
        %v532 = vsel %vm364, %v447, %v507
        %v533 = vsel %vm364, %v462, %v512
        %v534 = vsel %vm364, %v463, %v513
        %v535 = vsel %vm364, %v438, %v518
        %v536 = vsel %vm364, %v439, %v519
        %v537 = vsel %vm364, %v486, %v524
        %v538 = vsel %vm364, %v487, %v525
        %v539 = vsel %vm364, %v502, %v529
        %v540 = vsel %vm364, %v503, %v242
        %v541 = vpack.c.bf16 %v533, %v531
        %v542 = vpack.c.bf16 %v534, %v532
        %v543 = vpack.c.bf16 %v537, %v535
        %v544 = vpack.c.bf16 %v538, %v536
        %v545 = vpack.c.bf16 %v539, %v539
        %v546 = vpack.c.bf16 %v540, %v540
        %v547 = vld [vmem:[%s3] sm:$0xf]
        %v548 = vld [vmem:[%s4] sm:$0xff]
        %550 = vset.pattern.permute.xlu0 0
        %551 = vperm.xlu0 %550, %v548
        %v552 = vpop.permute.xlu0 %551
        %vm554 = vcmask 326656
        %v556 = vsel %vm554, %v547, 0
        %v559 = vsel %vm364, %v545, 0
        %v562 = vsel %vm364, %v546, 0
        %564 = vmatprep.subr.bf16.mxu0 %v542
        %565 = vmatpush1.bf16.msra.mxu0 %v541
        %566 = vmatprep.subr.bf16.mxu0 %v544
        %567 = vmatpush1.bf16.msra.mxu0 %v543
        %568 = vmatprep.subr.bf16.mxu0 %v562
        %569 = vmatpush1.bf16.msra.mxu0 %v559
        %570 = vmatprep.subr.bf16.mxu0 0
        %571 = vmatpush1.bf16.msra.mxu0 0
        %572 = vmatprep.subr.bf16.mxu0 0
        %573 = vmatpush1.bf16.msra.mxu0 0
        %574 = vmatprep.subr.bf16.mxu0 0
        %575 = vmatpush1.bf16.msra.mxu0 0
        %576 = vmatprep.subr.bf16.mxu0 0
        %577 = vmatpush1.bf16.msra.mxu0 0
        %578 = vmatprep.subr.bf16.mxu0 0
        %579 = vmatpush1.bf16.msra.mxu0 0
        %580 = vmatprep.subr.bf16.mxu0 0
        %581 = vmatpush1.bf16.msra.mxu0 0
        %582 = vmatprep.subr.bf16.mxu0 0
        %583 = vmatpush1.bf16.msra.mxu0 0
        %584 = vmatprep.subr.bf16.mxu0 0
        %585 = vmatpush1.bf16.msra.mxu0 0
        %586 = vmatprep.subr.bf16.mxu0 0
        %587 = vmatpush1.bf16.msra.mxu0 0
        %588 = vmatprep.subr.bf16.mxu0 0
        %589 = vmatpush1.bf16.msra.mxu0 0
        %590 = vmatprep.subr.bf16.mxu0 0
        %591 = vmatpush1.bf16.msra.mxu0 0
        %592 = vmatprep.subr.bf16.mxu0 0
        %593 = vmatpush1.bf16.msra.mxu0 0
        %594 = vmatprep.subr.bf16.mxu0 0
        %595 = vmatpush1.bf16.msra.mxu0 0
        %596 = vmatprep.mubr.bf16.mxu0 0
        %597 = vmatmul.mubr.bf16.gmra.mrb[0].mxu0 %v556
        %v598 = vpop.f32.mrb[0].mxu0
        %v599 = vadd.f32 %v552, %v598
        %v600 = vpop.f32.mrb[0].mxu0
        %v601 = vadd.f32 %v552, %v600
        %v602 = vpop.f32.mrb[0].mxu0
        %v603 = vpop.f32.mrb[0].mxu0
        %604 = vdwg.mxu0
        %605 = vst [vmem:[%s240] sm:$0xff] %v599
        %606 = vst [vmem:[%s240 + $0x8] sm:$0xff] %v601
        %s607 = sand.u32 %s140, 1
        %s608 = scalar_lea.sflag [#allocation4], %s607
        %s609 = sand.u32 %s140, 1
        %s610 = smul.addr %s609, 16
        %s611 = scalar_lea.vmem [#allocation5], %s610
        // Predicated region
        $region45: #{tpu_custom_call.1} parent=39 // pred_check
          %p612 = pneg %p150
        $region46: #{tpu_custom_call.1} parent=39 // pred_check_branch
          %614 = sbr.rel (%p612) target = $region48
        $region47: #{tpu_custom_call.1} parent=39 // pred_region
          %s616 = ssub.s32 256, 256
          %617 = vsyncadd %s608, %s616
          %s618 = smul.addr %s22, 2
          %s619 = smul.addr %s618, 128
          %s620 = scalar_lea.hbm %s5, %s619
          %s622 = sshll.u32 %s611, 4
          %s623 = int_to_ptr.vmem [resolvable:$true] %s622
          %625 = dma.vmem_to_hbm [thread:$0]  %s623, 256, %s620, %s608
        $region48: #{tpu_custom_call.1} parent=39 // pred_fallthru
          _
      $region40: #{tpu_custom_call.1} parent=5 // pred_fallthru
        _
      %p626 = scmp.le.s32.totalorder 2, %s17
      // Predicated region
      $region49: #{tpu_custom_call.1} parent=5 // pred_check
        %p627 = pneg %p626
      $region50: #{tpu_custom_call.1} parent=5 // pred_check_branch
        %629 = sbr.rel (%p627) target = $region52
      $region51: #{tpu_custom_call.1} parent=5 // pred_region
        %s630 = ssub.s32 %s17, 2
        // Predicated region
        $region53: #{tpu_custom_call.1} parent=51 // pred_check
          %p631 = pneg %p156
        $region54: #{tpu_custom_call.1} parent=51 // pred_check_branch
          %633 = sbr.rel (%p631) target = $region56
        $region55: #{tpu_custom_call.1} parent=51 // pred_region
          %s634 = sand.u32 %s141, 1
          %s635 = scalar_lea.sflag [#allocation4], %s634
          %s636 = sand.u32 %s141, 1
          %s637 = smul.addr %s636, 16
          %s638 = scalar_lea.vmem [#allocation5], %s637
          %639 = dma.done %s635, 256
        $region56: #{tpu_custom_call.1} parent=51 // pred_fallthru
          _
      $region52: #{tpu_custom_call.1} parent=5 // pred_fallthru
        _
    $region6: #{tpu_custom_call.1} parent=1 // loop_footer
      %s21 = sadd.s32 1, %s17
    $region7: #{tpu_custom_call.1} parent=1 // loop_footer_branch
      %16 = sbr.rel target = $region3
    $region8: #{tpu_custom_call.1} parent=1 // loop_exit
      _
    %640 = vsyncpa [#allocation3], 1
    %s641 = scalar_lea.sflag [#allocation3], 1
    %642 = vsyncpa %s641, 1
    %643 = vsyncpa [#allocation4], 1
    %s644 = scalar_lea.sflag [#allocation4], 1
    %645 = vsyncpa %s644, 1

</llo_original>
